<compile_context>
chip_gen: v7x
topology: tpu7x:2x2x1
jax: 0.10.0
libtpu: 0.0.40
codegen_flags: <defaults>
</compile_context>

<pallas_src>
import functools

import jax
import jax.numpy as jnp
from jax.experimental import pallas as pl
from jax.experimental.pallas import tpu as pltpu


def _ce_label_smooth_kernel(logits_ref, targets_ref, partial_ref, *,
                            epsilon, num_classes, batch_size, block_b):
    x = logits_ref[...].astype(jnp.float32)                     # (TB, K)
    tb, k = x.shape

    # Numerically stable log-sum-exp over the class (lane) axis.
    m = jnp.max(x, axis=1, keepdims=True)                       # (TB, 1)
    lse = m + jnp.log(jnp.sum(jnp.exp(x - m), axis=1, keepdims=True))

    # x[b, target_b] via a masked reduce — no one_hot / smoothed temporaries.
    labels = targets_ref[...]                                   # (TB, 1) int32
    col_ids = jax.lax.broadcasted_iota(jnp.int32, (tb, k), 1)
    x_at_t = jnp.sum(jnp.where(col_ids == labels, x, 0.0), axis=1, keepdims=True)
    x_sum = jnp.sum(x, axis=1, keepdims=True)

    # eps/K uses the true num_classes from the wrapper (not the block's k), so
    # class padding / tiling can never silently change the smoothing constant.
    per_row = lse - (1.0 - epsilon) * x_at_t - (epsilon / num_classes) * x_sum

    # Mask rows past the true batch size (a partial last tile reads
    # unspecified data; jnp.where keeps NaNs from propagating).
    row_ids = (pl.program_id(0) * block_b
               + jax.lax.broadcasted_iota(jnp.int32, (tb, 1), 0))
    per_row = jnp.where(row_ids < batch_size, per_row, 0.0)

    # Per-block partial sum, replicated into a full (1, 8, 128) block so the
    # store is unmasked / lane-dense. Final sum and *1/B live in the wrapper.
    block_sum = jnp.sum(per_row, axis=0, keepdims=True)          # (1, 1)
    partial_ref[...] = jnp.broadcast_to(
        block_sum.reshape((1, 1, 1)), partial_ref.shape).astype(partial_ref.dtype)


def _choose_block_b(batch, num_classes, itemsize):
    # Sublane granularity: 8 rows for 32-bit dtypes, 16 for 16-bit, 32 for 8-bit.
    sublane = max(8, 32 // max(itemsize, 1))
    # Budget ~8 MiB of double-buffered logits per input tile: comfortably inside
    # the 32 MiB scoped-VMEM default on v5e/v6e and on v7x (64 MiB total VMEM).
    budget = 8 * 1024 * 1024
    tb = budget // (2 * num_classes * max(itemsize, 1))
    tb = int(max(sublane, min(tb, 1024)))
    return (tb // sublane) * sublane


def cross_entropy_label_smooth(inputs, targets, num_classes, epsilon=0.1,
                               block_b=None):
    """inputs: (B, num_classes) float (any dtype); targets: (B,) integer labels."""
    b, k = inputs.shape
    assert k == num_classes, (k, num_classes)

    itemsize = jnp.dtype(inputs.dtype).itemsize
    sublane = max(8, 32 // max(itemsize, 1))
    if block_b is None:
        block_b = _choose_block_b(b, k, itemsize)
    if block_b >= b:
        block_b = b                              # one full-batch block (always legal)
    else:
        block_b = max(sublane, (block_b // sublane) * sublane)
    num_blocks = pl.cdiv(b, block_b)

    # Labels as (B, 1) int32 so the kernel builds the target mask with a 2-D
    # iota. Kept as a (TB, 1) VMEM block: the masked int32 load is tiny and it
    # avoids the lane->sublane relayout a (1, TB) layout would require.
    targets_2d = targets.astype(jnp.int32).reshape(b, 1)

    kernel = functools.partial(
        _ce_label_smooth_kernel,
        epsilon=float(epsilon),
        num_classes=int(num_classes),
        batch_size=int(b),
        block_b=int(block_b),
    )

    partials = pl.pallas_call(
        kernel,
        out_shape=jax.ShapeDtypeStruct((num_blocks, 8, 128), jnp.float32),
        grid_spec=pltpu.PrefetchScalarGridSpec(
            num_scalar_prefetch=0,
            grid=(num_blocks,),
            in_specs=[
                pl.BlockSpec((block_b, k), lambda i: (i, 0)),
                pl.BlockSpec((block_b, 1), lambda i: (i, 0)),
            ],
            out_specs=pl.BlockSpec((1, 8, 128), lambda i: (i, 0, 0)),
        ),
        compiler_params=pltpu.CompilerParams(
            # Batch blocks are fully independent -> megacore-shardable on v7x.
            dimension_semantics=("parallel",),
            vmem_limit_bytes=32 * 1024 * 1024,
        ),
    )(inputs, targets_2d)          # NOTE: logits passed in native dtype, no cast.

    # NOTE: for vocab-scale num_classes (>= ~8k) the class axis should also be
    # tiled with an online (flash-style) LSE; K here is small, so a full-K
    # block per step keeps this a single pass at the HBM roofline.
    return jnp.sum(partials[:, 0, 0]) * (1.0 / b)


def _reference(inputs, targets, num_classes, epsilon=0.1):
    log_probs = jax.nn.log_softmax(inputs.astype(jnp.float32), axis=1)
    one_hot = jax.nn.one_hot(targets, num_classes, dtype=jnp.float32)
    smoothed = (1.0 - epsilon) * one_hot + epsilon / num_classes
    return (-smoothed * log_probs).mean(0).sum()


if __name__ == "__main__":
    B, K = 64, 32   # small batch / num_classes consistent with the module
    key = jax.random.PRNGKey(0)
    k_logits, k_labels = jax.random.split(key)
    logits = jax.random.normal(k_logits, (B, K), dtype=jnp.float32)
    labels = jax.random.randint(k_labels, (B,), 0, K, dtype=jnp.int32)

    # block_b=16 forces a 4-step grid so the tiled / parallel path is exercised.
    loss = cross_entropy_label_smooth(logits, labels, num_classes=K,
                                      epsilon=0.1, block_b=16)
    loss = jax.block_until_ready(loss)
    ref = _reference(logits, labels, num_classes=K, epsilon=0.1)
    assert jnp.allclose(loss, ref, rtol=1e-5, atol=1e-5), (loss, ref)

    # Native-dtype path: bf16 logits go straight into the kernel (no wrapper
    # cast -> no extra f32 copy in HBM); f32 cast happens on the VMEM tile.
    logits_bf16 = logits.astype(jnp.bfloat16)
    loss_bf16 = jax.block_until_ready(
        cross_entropy_label_smooth(logits_bf16, labels, num_classes=K,
                                   epsilon=0.1, block_b=16))
    ref_bf16 = _reference(logits_bf16, labels, num_classes=K, epsilon=0.1)
    assert jnp.allclose(loss_bf16, ref_bf16, rtol=1e-4, atol=1e-4), (loss_bf16, ref_bf16)

    print("KERNEL_OK")
</pallas_src>

<mosaic_0001>
module attributes {stable_mosaic.version = 11 : i64} {
  func.func @_ce_label_smooth_kernel(%arg0: i32, %arg1: memref<16x32xf32, #tpu.memory_space<vmem>>, %arg2: memref<16x1xi32, #tpu.memory_space<vmem>>, %arg3: memref<1x8x128xf32, #tpu.memory_space<vmem>>) attributes {dimension_semantics = [#tpu.dimension_semantics<parallel>], iteration_bounds = array<i64: 4>, scalar_prefetch = 0 : i64, scratch_operands = 0 : i64, tpu.core_type = #tpu.core_type<tc>, window_params = [{transform_indices = @transform_0, window_bounds = array<i64: 16, 32>}, {transform_indices = @transform_1, window_bounds = array<i64: 16, 1>}, {transform_indices = @transform_2, window_bounds = array<i64: 1, 8, 128>}]} {
    %c0 = arith.constant 0 : index
    %c0_0 = arith.constant 0 : index
    %0 = vector.load %arg1[%c0, %c0_0] : memref<16x32xf32, #tpu.memory_space<vmem>>, vector<16x32xf32>
    %cst = arith.constant dense<0xFF800000> : vector<16xf32>
    %1 = vector.multi_reduction <maximumf>, %0, %cst [1] : vector<16x32xf32> to vector<16xf32>
    %2 = vector.shape_cast %1 : vector<16xf32> to vector<16x1xf32>
    %3 = vector.broadcast %2 : vector<16x1xf32> to vector<16x32xf32>
    %4 = arith.subf %0, %3 : vector<16x32xf32>
    %5 = math.exp %4 : vector<16x32xf32>
    %cst_1 = arith.constant dense<0.000000e+00> : vector<16xf32>
    %6 = vector.multi_reduction <add>, %5, %cst_1 [1] : vector<16x32xf32> to vector<16xf32>
    %7 = vector.shape_cast %6 : vector<16xf32> to vector<16x1xf32>
    %8 = math.log %7 : vector<16x1xf32>
    %9 = arith.addf %2, %8 : vector<16x1xf32>
    %c0_2 = arith.constant 0 : index
    %c0_3 = arith.constant 0 : index
    %10 = vector.load %arg2[%c0_2, %c0_3] : memref<16x1xi32, #tpu.memory_space<vmem>>, vector<16x1xi32>
    %11 = tpu.iota {dimensions = array<i32: 1>} : vector<16x32xi32>
    %12 = vector.broadcast %10 : vector<16x1xi32> to vector<16x32xi32>
    %13 = arith.cmpi eq, %11, %12 : vector<16x32xi32>
    %cst_4 = arith.constant 0.000000e+00 : f32
    %14 = vector.broadcast %cst_4 : f32 to vector<16x32xf32>
    %15 = arith.select %13, %0, %14 : vector<16x32xi1>, vector<16x32xf32>
    %cst_5 = arith.constant dense<0.000000e+00> : vector<16xf32>
    %16 = vector.multi_reduction <add>, %15, %cst_5 [1] : vector<16x32xf32> to vector<16xf32>
    %17 = vector.shape_cast %16 : vector<16xf32> to vector<16x1xf32>
    %cst_6 = arith.constant dense<0.000000e+00> : vector<16xf32>
    %18 = vector.multi_reduction <add>, %0, %cst_6 [1] : vector<16x32xf32> to vector<16xf32>
    %19 = vector.shape_cast %18 : vector<16xf32> to vector<16x1xf32>
    %cst_7 = arith.constant 0.899999976 : f32
    %20 = vector.broadcast %cst_7 : f32 to vector<16x1xf32>
    %21 = arith.mulf %20, %17 : vector<16x1xf32>
    %22 = arith.subf %9, %21 : vector<16x1xf32>
    %cst_8 = arith.constant 3.125000e-03 : f32
    %23 = vector.broadcast %cst_8 : f32 to vector<16x1xf32>
    %24 = arith.mulf %23, %19 : vector<16x1xf32>
    %25 = arith.subf %22, %24 : vector<16x1xf32>
    %c16_i32 = arith.constant 16 : i32
    %26 = arith.muli %arg0, %c16_i32 : i32
    %27 = tpu.iota {dimensions = array<i32: 0>} : vector<16x1xi32>
    %28 = vector.broadcast %26 : i32 to vector<16x1xi32>
    %29 = arith.addi %28, %27 : vector<16x1xi32>
    %c64_i32 = arith.constant 64 : i32
    %30 = vector.broadcast %c64_i32 : i32 to vector<16x1xi32>
    %31 = arith.cmpi slt, %29, %30 : vector<16x1xi32>
    %cst_9 = arith.constant 0.000000e+00 : f32
    %32 = vector.broadcast %cst_9 : f32 to vector<16x1xf32>
    %33 = arith.select %31, %25, %32 : vector<16x1xi1>, vector<16x1xf32>
    %cst_10 = arith.constant dense<0.000000e+00> : vector<1xf32>
    %34 = vector.multi_reduction <add>, %33, %cst_10 [0] : vector<16x1xf32> to vector<1xf32>
    %35 = vector.shape_cast %34 : vector<1xf32> to vector<1x1xf32>
    %36 = vector.shape_cast %35 : vector<1x1xf32> to vector<1x1x1xf32>
    %37 = vector.shape_cast %36 : vector<1x1x1xf32> to vector<1x1x1xf32>
    %38 = vector.broadcast %37 : vector<1x1x1xf32> to vector<1x8x128xf32>
    %c0_11 = arith.constant 0 : index
    %c0_12 = arith.constant 0 : index
    %c0_13 = arith.constant 0 : index
    %39 = vector.load %arg3[%c0_11, %c0_12, %c0_13] : memref<1x8x128xf32, #tpu.memory_space<vmem>>, vector<1x8x128xf32>
    tpu.vector_store %arg3[%c0_11, %c0_12, %c0_13], %38 {strides = array<i32>} : memref<1x8x128xf32, #tpu.memory_space<vmem>>, vector<1x8x128xf32>,
    return
  }
  func.func @transform_0(%arg0: i32) -> (i32, i32) {
    %c0_i32 = arith.constant 0 : i32
    %c0_i32_0 = arith.constant 0 : i32
    return %arg0, %c0_i32 : i32, i32
  }
  func.func @transform_1(%arg0: i32) -> (i32, i32) {
    %c0_i32 = arith.constant 0 : i32
    %c0_i32_0 = arith.constant 0 : i32
    return %arg0, %c0_i32 : i32, i32
  }
  func.func @transform_2(%arg0: i32) -> (i32, i32, i32) {
    %c0_i32 = arith.constant 0 : i32
    %c0_i32_0 = arith.constant 0 : i32
    %c0_i32_1 = arith.constant 0 : i32
    return %arg0, %c0_i32, %c0_i32_0 : i32, i32, i32
  }
}

</mosaic_0001>

<llo_original>
// kernel: tpu_custom_call.1
$region0: #{tpu_custom_call.1}
  #allocation0 [shape = 'u32[]', space=smem, size = 0x4, offset = 0x4, fixed_abs, tag = 'smem constant byte address 0x4 - core index']
  #allocation1 [shape = 'u32[144,128]{1,0:T(1,128)}', space=vmem, size = 0x12000, scoped, tag = 'internal scratch']
  %s0 = inlined_call_operand.vmem [shape: f32[64,32], index: 0, kind: input, shape index: {}]
  %s1 = inlined_call_operand.vmem [shape: s32[64,1], index: 1, kind: input, shape index: {}]
  %s2 = inlined_call_operand.hbm [shape: f32[4,8,128], index: 2, kind: output, shape index: {}]
  %s3 = sld [smem:[#allocation0]]
  $region41: #{tpu_custom_call.1} parent=0
    _
  %s5 = ssub.s32 1, %s3
  %s6 = scalar_select 0, %s5, %s3
  $region1: #{tpu_custom_call.1} parent=0
    #allocation2 [shape = 'u8[8192]{0}', space=vmem, size = 0x2000, scoped, tag = 'output window, operand 0']
    #allocation3 [shape = 's32[2]{0}', space=sflag, size = 0x8, scoped, tag = 'scoped memory for tpu_custom_call.1']
    %7 = vsyncpa [#allocation3], 0
    %s8 = scalar_lea.sflag [#allocation3], 1
    %9 = vsyncpa %s8, 0
    loop: start=0, step=1, limit=6
    $region2: #{tpu_custom_call.1} parent=1 // loop_pre_header
      _
    $region3: #{tpu_custom_call.1} parent=1 // loop_header
      %s11 = sphi 0, %s15
      %p12 = scmp.ge.s32.totalorder %s11, 6
      %s21 = sphi 0, %s23
      %s24 = sphi 0, %s21
      %s25 = sphi 0, %s24
      %s41 = sphi 0, %s25
      %s47 = sphi 0, %s49
      %s50 = sphi 0, %s47
      %s51 = sphi 0, %s50
      %s67 = sphi 0, %s51
      %s73 = sphi 0, %s75
      %s76 = sphi 0, %s73
      %s77 = sphi 0, %s76
      %s93 = sphi 0, %s77
    $region4: #{tpu_custom_call.1} parent=1 // loop_header_branch
      %14 = sbr.rel (%p12) target = $region8
    $region5: #{tpu_custom_call.1} parent=1 // loop_body
      %s16 = ssub.s32 %s11, 1
      %s17 = ssub.s32 %s11, 2
      %s18 = sadd.s32 %s11, 1
      %s19 = ssub.s32 %s11, %s18
      %p20 = scmp.eq.s32.totalorder %s19, 0
      %s22 = sadd.s32 %s21, 1
      %s23 = scalar_select %p20, %s21, %s22
      %p26 = pneg %p20
      %p27 = scmp.eq.s32.totalorder %s11, 3
      %p28 = por %p26, %p27
      %p29 = scmp.ne.s32.totalorder %s21, %s24
      %p30 = scmp.eq.s32.totalorder %s11, 0
      %p31 = por %p29, %p30
      %p32 = scmp.ne.s32.totalorder %s21, %s24
      %p33 = scmp.eq.s32.totalorder %s16, 3
      %p34 = por %p32, %p33
      %p35 = scmp.ne.s32.totalorder %s24, %s25
      %p36 = scmp.eq.s32.totalorder %s16, 0
      %p37 = por %p35, %p36
      %p38 = scmp.ne.s32.totalorder %s24, %s25
      %p39 = scmp.eq.s32.totalorder %s17, 3
      %p40 = por %p38, %p39
      %p42 = scmp.ne.s32.totalorder %s25, %s41
      %p43 = scmp.eq.s32.totalorder %s17, 0
      %p44 = por %p42, %p43
      %s45 = ssub.s32 %s11, %s18
      %p46 = scmp.eq.s32.totalorder %s45, 0
      %s48 = sadd.s32 %s47, 1
      %s49 = scalar_select %p46, %s47, %s48
      %p52 = pneg %p46
      %p53 = scmp.eq.s32.totalorder %s11, 3
      %p54 = por %p52, %p53
      %p55 = scmp.ne.s32.totalorder %s47, %s50
      %p56 = scmp.eq.s32.totalorder %s11, 0
      %p57 = por %p55, %p56
      %p58 = scmp.ne.s32.totalorder %s47, %s50
      %p59 = scmp.eq.s32.totalorder %s16, 3
      %p60 = por %p58, %p59
      %p61 = scmp.ne.s32.totalorder %s50, %s51
      %p62 = scmp.eq.s32.totalorder %s16, 0
      %p63 = por %p61, %p62
      %p64 = scmp.ne.s32.totalorder %s50, %s51
      %p65 = scmp.eq.s32.totalorder %s17, 3
      %p66 = por %p64, %p65
      %p68 = scmp.ne.s32.totalorder %s51, %s67
      %p69 = scmp.eq.s32.totalorder %s17, 0
      %p70 = por %p68, %p69
      %s71 = ssub.s32 %s11, %s18
      %p72 = scmp.eq.s32.totalorder %s71, 0
      %s74 = sadd.s32 %s73, 1
      %s75 = scalar_select %p72, %s73, %s74
      %p78 = pneg %p72
      %p79 = scmp.eq.s32.totalorder %s11, 3
      %p80 = por %p78, %p79
      %p81 = scmp.ne.s32.totalorder %s73, %s76
      %p82 = scmp.eq.s32.totalorder %s11, 0
      %p83 = por %p81, %p82
      %p84 = scmp.ne.s32.totalorder %s73, %s76
      %p85 = scmp.eq.s32.totalorder %s16, 3
      %p86 = por %p84, %p85
      %p87 = scmp.ne.s32.totalorder %s76, %s77
      %p88 = scmp.eq.s32.totalorder %s16, 0
      %p89 = por %p87, %p88
      %p90 = scmp.ne.s32.totalorder %s76, %s77
      %p91 = scmp.eq.s32.totalorder %s17, 3
      %p92 = por %p90, %p91
      %p94 = scmp.ne.s32.totalorder %s77, %s93
      %p95 = scmp.eq.s32.totalorder %s17, 0
      %p96 = por %p94, %p95
      %p97 = scmp.le.s32.totalorder 1, %s11
      %p98 = scmp.lt.s32.totalorder %s11, 5
      %p99 = pnand %p97, %p98
      %p100 = pneg %p99
      // Predicated region
      $region9: #{tpu_custom_call.1} parent=5 // pred_check
        _
      $region10: #{tpu_custom_call.1} parent=5 // pred_check_branch
        %102 = sbr.rel (%p99) target = $region12
      $region11: #{tpu_custom_call.1} parent=5 // pred_region
        %s103 = ssub.s32 %s11, 1
      $region12: #{tpu_custom_call.1} parent=5 // pred_fallthru
        _
      %p104 = scmp.lt.s32.totalorder %s11, 4
      // Predicated region
      $region13: #{tpu_custom_call.1} parent=5 // pred_check
        %p105 = pneg %p104
      $region14: #{tpu_custom_call.1} parent=5 // pred_check_branch
        %107 = sbr.rel (%p105) target = $region16
      $region15: #{tpu_custom_call.1} parent=5 // pred_region
        // Predicated region
        $region17: #{tpu_custom_call.1} parent=15 // pred_check
          %p108 = pneg %p31
        $region18: #{tpu_custom_call.1} parent=15 // pred_check_branch
          %110 = sbr.rel (%p108) target = $region20
        $region19: #{tpu_custom_call.1} parent=15 // pred_region
          %s111 = smul.u32 2, %s11
          %p112 = scmp.lt.s32.totalorder %s111, 7
          %s113 = scalar_select %p112, %s111, 7
          %s114 = smul.addr %s113, 8
          %s115 = scalar_lea.vmem %s0, %s114
          %s116 = smul.u32 2, %s11
        $region20: #{tpu_custom_call.1} parent=15 // pred_fallthru
          _
        // Predicated region
        $region21: #{tpu_custom_call.1} parent=15 // pred_check
          %p117 = pneg %p57
        $region22: #{tpu_custom_call.1} parent=15 // pred_check_branch
          %119 = sbr.rel (%p117) target = $region24
        $region23: #{tpu_custom_call.1} parent=15 // pred_region
          %s120 = smul.u32 2, %s11
          %p121 = scmp.lt.s32.totalorder %s120, 7
          %s122 = scalar_select %p121, %s120, 7
          %s123 = smul.addr %s122, 8
          %s124 = scalar_lea.vmem %s1, %s123
          %s125 = smul.u32 2, %s11
        $region24: #{tpu_custom_call.1} parent=15 // pred_fallthru
          _
      $region16: #{tpu_custom_call.1} parent=5 // pred_fallthru
        _
      %p126 = scmp.le.s32.totalorder 1, %s11
      %p127 = scmp.lt.s32.totalorder %s11, 5
      %p128 = pnand %p126, %p127
      %p129 = pneg %p128
      // Predicated region
      $region25: #{tpu_custom_call.1} parent=5 // pred_check
        _
      $region26: #{tpu_custom_call.1} parent=5 // pred_check_branch
        %131 = sbr.rel (%p128) target = $region28
      $region27: #{tpu_custom_call.1} parent=5 // pred_region
        %s132 = ssub.s32 %s11, 1
        %s133 = smul.u32 2, %s16
        %p134 = scmp.lt.s32.totalorder %s133, 7
        %s135 = scalar_select %p134, %s133, 7
        %s136 = smul.addr %s135, 8
        %s137 = scalar_lea.vmem %s0, %s136
        %p138 = pneg %p37
        %p139 = pneg %p34
        %s140 = smul.u32 2, %s16
        %p141 = scmp.lt.s32.totalorder %s140, 7
        %s142 = scalar_select %p141, %s140, 7
        %s143 = smul.addr %s142, 8
        %s144 = scalar_lea.vmem %s1, %s143
        %p145 = pneg %p63
        %p146 = pneg %p60
        %p147 = pneg %p89
        %p148 = pneg %p86
        %s149 = sand.u32 %s76, 1
        %s150 = scalar_lea.sflag [#allocation3], %s149
        %s151 = sand.u32 %s76, 1
        %s152 = smul.addr %s151, 8
        %s153 = scalar_lea.vmem [#allocation2], %s152
        %s154 = smul.u32 2, %s16
        %p155 = scmp.lt.s32.totalorder %s154, 7
        %s156 = scalar_select %p155, %s154, 7
        %s157 = smul.addr %s156, 8
        %s158 = scalar_lea.vmem %s0, %s157
        %s159 = smul.u32 2, %s16
        %s160 = smul.u32 2, %s16
        %p161 = scmp.lt.s32.totalorder %s160, 7
        %s162 = scalar_select %p161, %s160, 7
        %s163 = smul.addr %s162, 8
        %s164 = scalar_lea.vmem %s1, %s163
        %s165 = smul.u32 2, %s16
        %v166 = vld [vmem:[%s158] sm:$0xff]
        %v167 = vld [vmem:[%s158 + $0x8] sm:$0xff]
        %vm168 = vcmask 261120
        %v169 = vsel %vm168, %v166, -inf
        %170 = vmax.xlane.f32.xlu0 %v169
        %v171 = vpop.xlane.xlu0 %170
        %v172 = vsel %vm168, %v167, -inf
        %173 = vmax.xlane.f32.xlu0 %v172
        %v174 = vpop.xlane.xlu0 %173
        %v175 = vsub.f32 %v166, %v171
        %v176 = vsub.f32 %v167, %v174
        %v177 = vmul.f32 %v175, 1.442695
        %v178 = vpow.pop %v177
        %v179 = vmul.f32 %v176, 1.442695
        %v180 = vpow.pop %v179
        %v181 = vsel %vm168, %v178, 0.0
        %182 = vadd.xlane.f32.xlu0 %v181
        %v183 = vpop.xlane.xlu0 %182
        %v184 = vsel %vm168, %v180, 0.0
        %185 = vadd.xlane.f32.xlu0 %v184
        %v186 = vpop.xlane.xlu0 %185
        %v187 = vlog2.pop %v183
        %v188 = vmul.f32 %v187, 0.6931472
        %v189 = vlog2.pop %v186
        %v190 = vmul.f32 %v189, 0.6931472
        %v191 = vadd.f32 %v171, %v188
        %v192 = vadd.f32 %v174, %v190
        %v193 = vld [vmem:[%s164] sm:$0xff]
        %v194 = vld [vmem:[%s164 + $0x8] sm:$0xff]
        %v195 = vlaneseq
        %v196 = vand.u32 %v195, 127
        %197 = vset.pattern.permute.xlu0 0
        %198 = vperm.xlu0 %197, %v193
        %v199 = vpop.permute.xlu0 %198
        %200 = vset.pattern.permute.xlu0 0
        %201 = vperm.xlu0 %200, %v194
        %v202 = vpop.permute.xlu0 %201
        %vm203 = vcmp.eq.s32.totalorder %v196, %v199
        %vm204 = vcmp.eq.s32.totalorder %v196, %v202
        %v205 = vsel %vm203, %v166, 0.0
        %v206 = vsel %vm204, %v167, 0.0
        %v207 = vsel %vm168, %v205, 0.0
        %208 = vadd.xlane.f32.xlu0 %v207
        %v209 = vpop.xlane.xlu0 %208
        %v210 = vsel %vm168, %v206, 0.0
        %211 = vadd.xlane.f32.xlu0 %v210
        %v212 = vpop.xlane.xlu0 %211
        %v213 = vsel %vm168, %v166, 0.0
        %214 = vadd.xlane.f32.xlu0 %v213
        %v215 = vpop.xlane.xlu0 %214
        %v216 = vsel %vm168, %v167, 0.0
        %217 = vadd.xlane.f32.xlu0 %v216
        %v218 = vpop.xlane.xlu0 %217
        %v219 = vmul.f32 %v209, 0.9
        %v220 = vmul.f32 %v212, 0.9
        %v221 = vsub.f32 %v191, %v219
        %v222 = vsub.f32 %v192, %v220
        %v223 = vmul.f32 %v215, 0.003125
        %v224 = vmul.f32 %v218, 0.003125
        %v225 = vsub.f32 %v221, %v223
        %v226 = vsub.f32 %v222, %v224
        %s227 = smul.u32 %s16, 16
        %v228 = vlaneseq
        %v229 = vshrl.u32 %v228, 7
        %v230 = vadd.s32 %v229, 8
        %v231 = vstv %s227
        %v232 = vadd.s32 %v231, %v229
        %v233 = vadd.s32 %v231, %v230
        %vm234 = vcmp.lt.s32.totalorder %v232, 64
        %vm235 = vcmp.lt.s32.totalorder %v233, 64
        %v236 = vsel %vm234, %v225, 0.0
        %v237 = vsel %vm235, %v226, 0.0
        %v238 = vadd.f32 %v236, %v237
        %v239 = vrot.slane %v238, 4
        %v240 = vadd.f32 %v238, %v239
        %v241 = vrot.slane %v240, 2
        %v242 = vadd.f32 %v240, %v241
        %v243 = vrot.slane %v242, 1
        %v244 = vadd.f32 %v242, %v243
        %245 = vst [vmem:[%s153] sm:$0xff] %v244
        %s246 = sand.u32 %s76, 1
        %s247 = scalar_lea.sflag [#allocation3], %s246
        %s248 = sand.u32 %s76, 1
        %s249 = smul.addr %s248, 8
        %s250 = scalar_lea.vmem [#allocation2], %s249
        // Predicated region
        $region29: #{tpu_custom_call.1} parent=27 // pred_check
          %p251 = pneg %p86
        $region30: #{tpu_custom_call.1} parent=27 // pred_check_branch
          %253 = sbr.rel (%p251) target = $region32
        $region31: #{tpu_custom_call.1} parent=27 // pred_region
          %s255 = ssub.s32 128, 128
          %256 = vsyncadd %s247, %s255
          %s257 = smul.addr %s16, 128
          %s258 = scalar_lea.hbm %s2, %s257
          %s260 = sshll.u32 %s250, 4
          %s261 = int_to_ptr.vmem [resolvable:$true] %s260
          %263 = dma.vmem_to_hbm [thread:$0]  %s261, 128, %s258, %s247
        $region32: #{tpu_custom_call.1} parent=27 // pred_fallthru
          _
      $region28: #{tpu_custom_call.1} parent=5 // pred_fallthru
        _
      %p264 = scmp.le.s32.totalorder 2, %s11
      // Predicated region
      $region33: #{tpu_custom_call.1} parent=5 // pred_check
        %p265 = pneg %p264
      $region34: #{tpu_custom_call.1} parent=5 // pred_check_branch
        %267 = sbr.rel (%p265) target = $region36
      $region35: #{tpu_custom_call.1} parent=5 // pred_region
        %s268 = ssub.s32 %s11, 2
        // Predicated region
        $region37: #{tpu_custom_call.1} parent=35 // pred_check
          %p269 = pneg %p92
        $region38: #{tpu_custom_call.1} parent=35 // pred_check_branch
          %271 = sbr.rel (%p269) target = $region40
        $region39: #{tpu_custom_call.1} parent=35 // pred_region
          %s272 = sand.u32 %s77, 1
          %s273 = scalar_lea.sflag [#allocation3], %s272
          %s274 = sand.u32 %s77, 1
          %s275 = smul.addr %s274, 8
          %s276 = scalar_lea.vmem [#allocation2], %s275
          %277 = dma.done %s273, 128
        $region40: #{tpu_custom_call.1} parent=35 // pred_fallthru
          _
      $region36: #{tpu_custom_call.1} parent=5 // pred_fallthru
        _
    $region6: #{tpu_custom_call.1} parent=1 // loop_footer
      %s15 = sadd.s32 1, %s11
    $region7: #{tpu_custom_call.1} parent=1 // loop_footer_branch
      %10 = sbr.rel target = $region3
    $region8: #{tpu_custom_call.1} parent=1 // loop_exit
      _
    %278 = vsyncpa [#allocation3], 1
    %s279 = scalar_lea.sflag [#allocation3], 1
    %280 = vsyncpa %s279, 1

</llo_original>
